<compile_context>
chip_gen: v5e
topology: v5e:2x2
jax: 0.10.0
libtpu: 0.0.40
codegen_flags: <defaults>
</compile_context>

<pallas_src>
import functools

import jax
import jax.numpy as jnp
import numpy as np
from jax import lax
from jax.experimental import pallas as pl
from jax.experimental.pallas import tpu as pltpu

_LANES = 128


# ----------------------------------------------------------------------------
# Pallas kernel: fused dropout-mask generation + complex scaling.
# ----------------------------------------------------------------------------
def _complex_dropout_kernel(seed_ref, x_ref, o_ref, *, p_drop, scale):
    # seed_ref : SMEM (1,) int32   (scalar-prefetch arg)
    # x_ref    : (tile_rows, 128)  flat view of the input (complex dim innermost)
    # o_ref    : (tile_rows, 128)
    tr, ln = x_ref.shape
    i = pl.program_id(0)

    # Global flat element index of every (sublane, lane) position in this tile.
    row = lax.broadcasted_iota(jnp.int32, (tr, ln), 0)
    col = lax.broadcasted_iota(jnp.int32, (tr, ln), 1)
    flat = (i * tr + row) * ln + col
    # Real/imag of one complex number are adjacent in the flat view -> they
    # share the same "pair" index and therefore the same dropout decision.
    pair = flat >> 1

    seed = seed_ref[0]
    x0 = (pair + seed).astype(jnp.uint32)
    x1 = pair.astype(jnp.uint32) ^ jnp.uint32(0x9E3779B9)

    # 12 threefry-style ARX rounds: good avalanche using only add/shift/xor
    # (cheap VPU ops; this op is memory-bound so the hash is fully hidden).
    for r in (13, 15, 26, 6, 17, 29, 16, 24, 13, 15, 26, 6):
        x0 = x0 + x1
        x1 = ((x1 << r) | (x1 >> (32 - r))) ^ x0
    h = x0 + (x1 ^ jnp.uint32(0x1BD11BDA))

    # Uniform in [0, 1): top 23 bits into the mantissa of [1, 2), subtract 1.
    u = lax.bitcast_convert_type((h >> 9) | jnp.uint32(0x3F800000),
                                 jnp.float32) - jnp.float32(1.0)
    keep = u >= jnp.float32(p_drop)
    mask = jnp.where(keep, jnp.float32(scale), jnp.float32(0.0))

    o_ref[...] = x_ref[...] * mask.astype(x_ref.dtype)


# ----------------------------------------------------------------------------
# Wrapper: ComplexDropout forward
# ----------------------------------------------------------------------------
def complex_dropout(x, seed, *, p=0.5, training=True, tile_rows=None):
    """
    x    : (..., 2) float array, last axis = (real, imag)  (PyTorch layout)
    seed : python int / int32 scalar controlling the dropout mask
    p    : the module's self.p (used only for the 1/(1-p) rescale, exactly as
           in the PyTorch code); the actual drop probability is the hard-coded
           nn.Dropout(p=0.5).
    returns array with the same shape/dtype as x.
    """
    orig_shape = x.shape
    assert orig_shape[-1] == 2, "last axis must be the real/imag pair"

    # Faithful to the (quirky) PyTorch module:
    #   training: kept value = (1/(1-0.5)) * (1/(1-p)), drop prob = 0.5
    #   eval    : nn.Dropout is identity -> mask = 1/(1-p) everywhere
    drop_p = 0.5 if training else 0.0
    scale = (1.0 / (1.0 - drop_p)) * (1.0 / (1.0 - p))

    total = int(np.prod(orig_shape))            # includes the factor of 2
    rows = pl.cdiv(total, _LANES)

    if tile_rows is None:
        # >=2 grid steps when possible (feeds both v7x TensorCores), capped at
        # 512 rows (256 KiB f32 per block) so double-buffered in+out tiles stay
        # tiny relative to any generation's VMEM.
        tile_rows = min(512, max(8, ((((rows + 1) // 2) + 7) // 8) * 8))

    num_tiles = pl.cdiv(rows, tile_rows)
    rows_p = num_tiles * tile_rows
    pad = rows_p * _LANES - total

    xf = x.reshape(total)                       # contiguous -> free reshape
    if pad:
        xf = jnp.pad(xf, ((0, pad),))
    xf = xf.reshape(rows_p, _LANES)             # lane-dense slab

    seed_arr = jnp.asarray([seed], jnp.int32)

    out = pl.pallas_call(
        functools.partial(_complex_dropout_kernel, p_drop=drop_p, scale=scale),
        out_shape=jax.ShapeDtypeStruct((rows_p, _LANES), x.dtype),
        grid_spec=pltpu.PrefetchScalarGridSpec(
            num_scalar_prefetch=1,
            grid=(num_tiles,),
            in_specs=[pl.BlockSpec((tile_rows, _LANES), lambda i, seed: (i, 0))],
            out_specs=pl.BlockSpec((tile_rows, _LANES), lambda i, seed: (i, 0)),
        ),
        compiler_params=pltpu.CompilerParams(
            dimension_semantics=("parallel",)),
    )(seed_arr, xf)

    out = out.reshape(rows_p * _LANES)
    if pad:
        out = out[:total]
    return out.reshape(orig_shape)


# ----------------------------------------------------------------------------
if __name__ == "__main__":
    # Small shapes consistent with the module: (N, C, H, W, 2)
    N, C, H, W = 2, 4, 16, 16
    p = 0.5
    seed = 1234

    key = jax.random.PRNGKey(0)
    x = jax.random.normal(key, (N, C, H, W, 2), jnp.float32)

    out = jax.block_until_ready(complex_dropout(x, seed, p=p))
    assert out.shape == x.shape, out.shape
    assert out.dtype == x.dtype, out.dtype

    # ---- structural correctness checks (torch RNG stream can't be matched) --
    drop_p = 0.5
    scale = (1.0 / (1.0 - drop_p)) * (1.0 / (1.0 - p))   # = 4.0 here

    x_np = np.asarray(x)
    out_np = np.asarray(out)

    # Infer the per-complex-element keep mask from the output; real & imag must
    # share it, and every output must be exactly scale*x (kept) or 0 (dropped).
    keep = (out_np[..., 0] != 0.0) | (out_np[..., 1] != 0.0)     # (N,C,H,W)
    mask_full = np.where(keep, np.float32(scale),
                         np.float32(0.0)).astype(np.float32)
    expected = x_np * mask_full[..., None]
    np.testing.assert_array_equal(out_np, expected)

    # Drop fraction should be close to the hard-coded nn.Dropout p=0.5.
    keep_frac = float(keep.mean())
    assert abs(keep_frac - (1.0 - drop_p)) < 0.1, keep_frac

    # Deterministic for a fixed seed.
    out2 = jax.block_until_ready(complex_dropout(x, seed, p=p))
    np.testing.assert_array_equal(np.asarray(out2), out_np)

    # Different seed -> different mask.
    out3 = jax.block_until_ready(complex_dropout(x, seed + 1, p=p))
    assert not np.array_equal(np.asarray(out3), out_np)

    # Eval-mode path: pure 1/(1-p) rescale, no dropping.
    out_eval = jax.block_until_ready(complex_dropout(x, seed, p=p, training=False))
    np.testing.assert_allclose(np.asarray(out_eval),
                               x_np * np.float32(1.0 / (1.0 - p)),
                               rtol=0, atol=0)

    print("KERNEL_OK")
</pallas_src>

<mosaic_0001>
module attributes {stable_mosaic.version = 11 : i64} {
  func.func @_complex_dropout_kernel(%arg0: i32, %arg1: memref<1xi32, #tpu.memory_space<smem>>, %arg2: memref<16x128xf32, #tpu.memory_space<vmem>>, %arg3: memref<16x128xf32, #tpu.memory_space<vmem>>) attributes {dimension_semantics = [#tpu.dimension_semantics<parallel>], iteration_bounds = array<i64: 2>, scalar_prefetch = 1 : i64, scratch_operands = 0 : i64, tpu.core_type = #tpu.core_type<tc>, window_params = [{transform_indices = @transform_0, window_bounds = array<i64: 16, 128>}, {transform_indices = @transform_1, window_bounds = array<i64: 16, 128>}]} {
    %0 = tpu.iota {dimensions = array<i32: 0>} : vector<16x128xi32>
    %1 = tpu.iota {dimensions = array<i32: 1>} : vector<16x128xi32>
    %c16_i32 = arith.constant 16 : i32
    %2 = arith.muli %arg0, %c16_i32 : i32
    %3 = vector.broadcast %2 : i32 to vector<16x128xi32>
    %4 = arith.addi %3, %0 : vector<16x128xi32>
    %c128_i32 = arith.constant 128 : i32
    %5 = vector.broadcast %c128_i32 : i32 to vector<16x128xi32>
    %6 = arith.muli %4, %5 : vector<16x128xi32>
    %7 = arith.addi %6, %1 : vector<16x128xi32>
    %c1_i32 = arith.constant 1 : i32
    %8 = vector.broadcast %c1_i32 : i32 to vector<16x128xi32>
    %9 = arith.shrsi %7, %8 : vector<16x128xi32>
    %c0 = arith.constant 0 : index
    %10 = memref.load %arg1[%c0] : memref<1xi32, #tpu.memory_space<smem>>
    %11 = vector.broadcast %10 : i32 to vector<16x128xi32>
    %12 = arith.addi %9, %11 : vector<16x128xi32>
    %c-1640531527_i32 = arith.constant -1640531527 : i32
    %13 = vector.broadcast %c-1640531527_i32 : i32 to vector<16x128xi32>
    %14 = arith.xori %9, %13 : vector<16x128xi32>
    %15 = arith.addi %12, %14 : vector<16x128xi32>
    %c13_i32 = arith.constant 13 : i32
    %16 = vector.broadcast %c13_i32 : i32 to vector<16x128xi32>
    %17 = arith.shli %14, %16 : vector<16x128xi32>
    %c19_i32 = arith.constant 19 : i32
    %18 = vector.broadcast %c19_i32 : i32 to vector<16x128xi32>
    %19 = arith.shrui %14, %18 : vector<16x128xi32>
    %20 = arith.ori %17, %19 : vector<16x128xi32>
    %21 = arith.xori %20, %15 : vector<16x128xi32>
    %22 = arith.addi %15, %21 : vector<16x128xi32>
    %c15_i32 = arith.constant 15 : i32
    %23 = vector.broadcast %c15_i32 : i32 to vector<16x128xi32>
    %24 = arith.shli %21, %23 : vector<16x128xi32>
    %c17_i32 = arith.constant 17 : i32
    %25 = vector.broadcast %c17_i32 : i32 to vector<16x128xi32>
    %26 = arith.shrui %21, %25 : vector<16x128xi32>
    %27 = arith.ori %24, %26 : vector<16x128xi32>
    %28 = arith.xori %27, %22 : vector<16x128xi32>
    %29 = arith.addi %22, %28 : vector<16x128xi32>
    %c26_i32 = arith.constant 26 : i32
    %30 = vector.broadcast %c26_i32 : i32 to vector<16x128xi32>
    %31 = arith.shli %28, %30 : vector<16x128xi32>
    %c6_i32 = arith.constant 6 : i32
    %32 = vector.broadcast %c6_i32 : i32 to vector<16x128xi32>
    %33 = arith.shrui %28, %32 : vector<16x128xi32>
    %34 = arith.ori %31, %33 : vector<16x128xi32>
    %35 = arith.xori %34, %29 : vector<16x128xi32>
    %36 = arith.addi %29, %35 : vector<16x128xi32>
    %c6_i32_0 = arith.constant 6 : i32
    %37 = vector.broadcast %c6_i32_0 : i32 to vector<16x128xi32>
    %38 = arith.shli %35, %37 : vector<16x128xi32>
    %c26_i32_1 = arith.constant 26 : i32
    %39 = vector.broadcast %c26_i32_1 : i32 to vector<16x128xi32>
    %40 = arith.shrui %35, %39 : vector<16x128xi32>
    %41 = arith.ori %38, %40 : vector<16x128xi32>
    %42 = arith.xori %41, %36 : vector<16x128xi32>
    %43 = arith.addi %36, %42 : vector<16x128xi32>
    %c17_i32_2 = arith.constant 17 : i32
    %44 = vector.broadcast %c17_i32_2 : i32 to vector<16x128xi32>
    %45 = arith.shli %42, %44 : vector<16x128xi32>
    %c15_i32_3 = arith.constant 15 : i32
    %46 = vector.broadcast %c15_i32_3 : i32 to vector<16x128xi32>
    %47 = arith.shrui %42, %46 : vector<16x128xi32>
    %48 = arith.ori %45, %47 : vector<16x128xi32>
    %49 = arith.xori %48, %43 : vector<16x128xi32>
    %50 = arith.addi %43, %49 : vector<16x128xi32>
    %c29_i32 = arith.constant 29 : i32
    %51 = vector.broadcast %c29_i32 : i32 to vector<16x128xi32>
    %52 = arith.shli %49, %51 : vector<16x128xi32>
    %c3_i32 = arith.constant 3 : i32
    %53 = vector.broadcast %c3_i32 : i32 to vector<16x128xi32>
    %54 = arith.shrui %49, %53 : vector<16x128xi32>
    %55 = arith.ori %52, %54 : vector<16x128xi32>
    %56 = arith.xori %55, %50 : vector<16x128xi32>
    %57 = arith.addi %50, %56 : vector<16x128xi32>
    %c16_i32_4 = arith.constant 16 : i32
    %58 = vector.broadcast %c16_i32_4 : i32 to vector<16x128xi32>
    %59 = arith.shli %56, %58 : vector<16x128xi32>
    %c16_i32_5 = arith.constant 16 : i32
    %60 = vector.broadcast %c16_i32_5 : i32 to vector<16x128xi32>
    %61 = arith.shrui %56, %60 : vector<16x128xi32>
    %62 = arith.ori %59, %61 : vector<16x128xi32>
    %63 = arith.xori %62, %57 : vector<16x128xi32>
    %64 = arith.addi %57, %63 : vector<16x128xi32>
    %c24_i32 = arith.constant 24 : i32
    %65 = vector.broadcast %c24_i32 : i32 to vector<16x128xi32>
    %66 = arith.shli %63, %65 : vector<16x128xi32>
    %c8_i32 = arith.constant 8 : i32
    %67 = vector.broadcast %c8_i32 : i32 to vector<16x128xi32>
    %68 = arith.shrui %63, %67 : vector<16x128xi32>
    %69 = arith.ori %66, %68 : vector<16x128xi32>
    %70 = arith.xori %69, %64 : vector<16x128xi32>
    %71 = arith.addi %64, %70 : vector<16x128xi32>
    %c13_i32_6 = arith.constant 13 : i32
    %72 = vector.broadcast %c13_i32_6 : i32 to vector<16x128xi32>
    %73 = arith.shli %70, %72 : vector<16x128xi32>
    %c19_i32_7 = arith.constant 19 : i32
    %74 = vector.broadcast %c19_i32_7 : i32 to vector<16x128xi32>
    %75 = arith.shrui %70, %74 : vector<16x128xi32>
    %76 = arith.ori %73, %75 : vector<16x128xi32>
    %77 = arith.xori %76, %71 : vector<16x128xi32>
    %78 = arith.addi %71, %77 : vector<16x128xi32>
    %c15_i32_8 = arith.constant 15 : i32
    %79 = vector.broadcast %c15_i32_8 : i32 to vector<16x128xi32>
    %80 = arith.shli %77, %79 : vector<16x128xi32>
    %c17_i32_9 = arith.constant 17 : i32
    %81 = vector.broadcast %c17_i32_9 : i32 to vector<16x128xi32>
    %82 = arith.shrui %77, %81 : vector<16x128xi32>
    %83 = arith.ori %80, %82 : vector<16x128xi32>
    %84 = arith.xori %83, %78 : vector<16x128xi32>
    %85 = arith.addi %78, %84 : vector<16x128xi32>
    %c26_i32_10 = arith.constant 26 : i32
    %86 = vector.broadcast %c26_i32_10 : i32 to vector<16x128xi32>
    %87 = arith.shli %84, %86 : vector<16x128xi32>
    %c6_i32_11 = arith.constant 6 : i32
    %88 = vector.broadcast %c6_i32_11 : i32 to vector<16x128xi32>
    %89 = arith.shrui %84, %88 : vector<16x128xi32>
    %90 = arith.ori %87, %89 : vector<16x128xi32>
    %91 = arith.xori %90, %85 : vector<16x128xi32>
    %92 = arith.addi %85, %91 : vector<16x128xi32>
    %c6_i32_12 = arith.constant 6 : i32
    %93 = vector.broadcast %c6_i32_12 : i32 to vector<16x128xi32>
    %94 = arith.shli %91, %93 : vector<16x128xi32>
    %c26_i32_13 = arith.constant 26 : i32
    %95 = vector.broadcast %c26_i32_13 : i32 to vector<16x128xi32>
    %96 = arith.shrui %91, %95 : vector<16x128xi32>
    %97 = arith.ori %94, %96 : vector<16x128xi32>
    %98 = arith.xori %97, %92 : vector<16x128xi32>
    %c466688986_i32 = arith.constant 466688986 : i32
    %99 = vector.broadcast %c466688986_i32 : i32 to vector<16x128xi32>
    %100 = arith.xori %98, %99 : vector<16x128xi32>
    %101 = arith.addi %92, %100 : vector<16x128xi32>
    %c9_i32 = arith.constant 9 : i32
    %102 = vector.broadcast %c9_i32 : i32 to vector<16x128xi32>
    %103 = arith.shrui %101, %102 : vector<16x128xi32>
    %c1065353216_i32 = arith.constant 1065353216 : i32
    %104 = vector.broadcast %c1065353216_i32 : i32 to vector<16x128xi32>
    %105 = arith.ori %103, %104 : vector<16x128xi32>
    %106 = tpu.bitcast %105 : vector<16x128xi32> -> vector<16x128xf32>
    %cst = arith.constant 1.000000e+00 : f32
    %107 = vector.broadcast %cst : f32 to vector<16x128xf32>
    %108 = arith.subf %106, %107 : vector<16x128xf32>
    %cst_14 = arith.constant 5.000000e-01 : f32
    %109 = vector.broadcast %cst_14 : f32 to vector<16x128xf32>
    %110 = arith.cmpf oge, %108, %109 : vector<16x128xf32>
    %cst_15 = arith.constant 4.000000e+00 : f32
    %cst_16 = arith.constant 0.000000e+00 : f32
    %111 = vector.broadcast %cst_15 : f32 to vector<16x128xf32>
    %112 = vector.broadcast %cst_16 : f32 to vector<16x128xf32>
    %113 = arith.select %110, %111, %112 : vector<16x128xi1>, vector<16x128xf32>
    %c0_17 = arith.constant 0 : index
    %c0_18 = arith.constant 0 : index
    %114 = vector.load %arg2[%c0_17, %c0_18] : memref<16x128xf32, #tpu.memory_space<vmem>>, vector<16x128xf32>
    %115 = arith.mulf %114, %113 : vector<16x128xf32>
    %c0_19 = arith.constant 0 : index
    %c0_20 = arith.constant 0 : index
    %116 = vector.load %arg3[%c0_19, %c0_20] : memref<16x128xf32, #tpu.memory_space<vmem>>, vector<16x128xf32>
    tpu.vector_store %arg3[%c0_19, %c0_20], %115 {strides = array<i32>} : memref<16x128xf32, #tpu.memory_space<vmem>>, vector<16x128xf32>,
    return
  }
  func.func @transform_0(%arg0: i32, %arg1: memref<1xi32, #tpu.memory_space<smem>>) -> (i32, i32) {
    %c0_i32 = arith.constant 0 : i32
    %c0_i32_0 = arith.constant 0 : i32
    return %arg0, %c0_i32 : i32, i32
  }
  func.func @transform_1(%arg0: i32, %arg1: memref<1xi32, #tpu.memory_space<smem>>) -> (i32, i32) {
    %c0_i32 = arith.constant 0 : i32
    %c0_i32_0 = arith.constant 0 : i32
    return %arg0, %c0_i32 : i32, i32
  }
}

</mosaic_0001>

<llo_original>
// kernel: tpu_custom_call.1
$region0: #{tpu_custom_call.1}
  #allocation0 [shape = 'u32[]', space=smem, size = 0x4, offset = 0x4, fixed_abs, tag = 'smem constant byte address 0x4 - core index']
  #allocation1 [shape = 'u32[72,128]{1,0:T(1,128)}', space=vmem, size = 0x9000, scoped, tag = 'internal scratch']
  #allocation2 [shape = 's32[1]{0}', space=sflag, size = 0x4, scoped, tag = 'scoped memory for tpu_custom_call.1']
  #allocation3 [shape = 's32[1]{0:T(128)S(6)}', space=smem, size = 0x200, scoped, tag = 'prefetched SMEM operand 0']
  %s0 = inlined_call_operand.<no memory space> [shape: s32[1], index: 0, kind: input, shape index: {}]
  %s1 = inlined_call_operand.hbm [shape: f32[32,128], index: 1, kind: input, shape index: {}]
  %s2 = inlined_call_operand.hbm [shape: f32[32,128], index: 2, kind: output, shape index: {}]
  %s3 = sld [smem:[#allocation0]]
  $region41: #{tpu_custom_call.1} parent=0
    _
  %s5 = ssub.s32 1, %s3
  %s6 = scalar_select 0, %s5, %s3
  %7 = sst [smem:[#allocation3]] %s0
  $region1: #{tpu_custom_call.1} parent=0
    #allocation4 [shape = 'u8[16384]{0}', space=vmem, size = 0x4000, scoped, tag = 'input window, operand 1']
    #allocation5 [shape = 's32[2]{0}', space=sflag, size = 0x8, scoped, tag = 'scoped memory for tpu_custom_call.1']
    #allocation6 [shape = 's32[2]{0}', space=sflag, size = 0x8, scoped, tag = 'scoped memory for tpu_custom_call.1']
    #allocation7 [shape = 'u8[16384]{0}', space=vmem, size = 0x4000, scoped, tag = 'output window, operand 0']
    %8 = vsyncpa [#allocation5], 0
    %s9 = scalar_lea.sflag [#allocation5], 1
    %10 = vsyncpa %s9, 0
    %11 = vsyncpa [#allocation6], 0
    %s12 = scalar_lea.sflag [#allocation6], 1
    %13 = vsyncpa %s12, 0
    loop: start=0, step=1, limit=4
    $region2: #{tpu_custom_call.1} parent=1 // loop_pre_header
      _
    $region3: #{tpu_custom_call.1} parent=1 // loop_header
      %s15 = sphi 0, %s19
      %p16 = scmp.ge.s32.totalorder %s15, 4
      %s25 = sphi 0, %s27
      %s28 = sphi 0, %s25
      %s29 = sphi 0, %s28
      %s45 = sphi 0, %s29
      %s51 = sphi 0, %s53
      %s54 = sphi 0, %s51
      %s55 = sphi 0, %s54
      %s71 = sphi 0, %s55
    $region4: #{tpu_custom_call.1} parent=1 // loop_header_branch
      %18 = sbr.rel (%p16) target = $region8
    $region5: #{tpu_custom_call.1} parent=1 // loop_body
      %s20 = ssub.s32 %s15, 1
      %s21 = ssub.s32 %s15, 2
      %s22 = sadd.s32 %s15, 1
      %s23 = ssub.s32 %s15, %s22
      %p24 = scmp.eq.s32.totalorder %s23, 0
      %s26 = sadd.s32 %s25, 1
      %s27 = scalar_select %p24, %s25, %s26
      %p30 = pneg %p24
      %p31 = scmp.eq.s32.totalorder %s15, 1
      %p32 = por %p30, %p31
      %p33 = scmp.ne.s32.totalorder %s25, %s28
      %p34 = scmp.eq.s32.totalorder %s15, 0
      %p35 = por %p33, %p34
      %p36 = scmp.ne.s32.totalorder %s25, %s28
      %p37 = scmp.eq.s32.totalorder %s20, 1
      %p38 = por %p36, %p37
      %p39 = scmp.ne.s32.totalorder %s28, %s29
      %p40 = scmp.eq.s32.totalorder %s20, 0
      %p41 = por %p39, %p40
      %p42 = scmp.ne.s32.totalorder %s28, %s29
      %p43 = scmp.eq.s32.totalorder %s21, 1
      %p44 = por %p42, %p43
      %p46 = scmp.ne.s32.totalorder %s29, %s45
      %p47 = scmp.eq.s32.totalorder %s21, 0
      %p48 = por %p46, %p47
      %s49 = ssub.s32 %s15, %s22
      %p50 = scmp.eq.s32.totalorder %s49, 0
      %s52 = sadd.s32 %s51, 1
      %s53 = scalar_select %p50, %s51, %s52
      %p56 = pneg %p50
      %p57 = scmp.eq.s32.totalorder %s15, 1
      %p58 = por %p56, %p57
      %p59 = scmp.ne.s32.totalorder %s51, %s54
      %p60 = scmp.eq.s32.totalorder %s15, 0
      %p61 = por %p59, %p60
      %p62 = scmp.ne.s32.totalorder %s51, %s54
      %p63 = scmp.eq.s32.totalorder %s20, 1
      %p64 = por %p62, %p63
      %p65 = scmp.ne.s32.totalorder %s54, %s55
      %p66 = scmp.eq.s32.totalorder %s20, 0
      %p67 = por %p65, %p66
      %p68 = scmp.ne.s32.totalorder %s54, %s55
      %p69 = scmp.eq.s32.totalorder %s21, 1
      %p70 = por %p68, %p69
      %p72 = scmp.ne.s32.totalorder %s55, %s71
      %p73 = scmp.eq.s32.totalorder %s21, 0
      %p74 = por %p72, %p73
      %p75 = scmp.le.s32.totalorder 1, %s15
      %p76 = scmp.lt.s32.totalorder %s15, 3
      %p77 = pnand %p75, %p76
      %p78 = pneg %p77
      // Predicated region
      $region9: #{tpu_custom_call.1} parent=5 // pred_check
        _
      $region10: #{tpu_custom_call.1} parent=5 // pred_check_branch
        %80 = sbr.rel (%p77) target = $region12
      $region11: #{tpu_custom_call.1} parent=5 // pred_region
        %s81 = ssub.s32 %s15, 1
      $region12: #{tpu_custom_call.1} parent=5 // pred_fallthru
        _
      %p82 = scmp.lt.s32.totalorder %s15, 2
      // Predicated region
      $region13: #{tpu_custom_call.1} parent=5 // pred_check
        %p83 = pneg %p82
      $region14: #{tpu_custom_call.1} parent=5 // pred_check_branch
        %85 = sbr.rel (%p83) target = $region16
      $region15: #{tpu_custom_call.1} parent=5 // pred_region
        // Predicated region
        $region17: #{tpu_custom_call.1} parent=15 // pred_check
          %p86 = pneg %p35
        $region18: #{tpu_custom_call.1} parent=15 // pred_check_branch
          %88 = sbr.rel (%p86) target = $region20
        $region19: #{tpu_custom_call.1} parent=15 // pred_region
          %s89 = sand.u32 %s25, 1
          %s90 = scalar_lea.sflag [#allocation5], %s89
          %s91 = sand.u32 %s25, 1
          %s92 = smul.addr %s91, 16
          %s93 = scalar_lea.vmem [#allocation4], %s92
          %s94 = smul.u32 2, %s15
          %96 = vsyncadd %s90, 0
          %s97 = smul.addr %s94, 8
          %s98 = scalar_lea.hbm %s1, %s97
          %s99 = sshll.u32 %s98, 4
          %s100 = int_to_ptr.hbm [resolvable:$true] %s99
          %s101 = sshll.u32 %s93, 4
          %s102 = int_to_ptr.vmem [resolvable:$true] %s101
          %107 = dma.hbm_to_vmem [thread:$0]  %s100, 256, %s102, %s90, 128, 128, 8
        $region20: #{tpu_custom_call.1} parent=15 // pred_fallthru
          _
      $region16: #{tpu_custom_call.1} parent=5 // pred_fallthru
        _
      %p108 = scmp.le.s32.totalorder 1, %s15
      %p109 = scmp.lt.s32.totalorder %s15, 3
      %p110 = pnand %p108, %p109
      %p111 = pneg %p110
      // Predicated region
      $region21: #{tpu_custom_call.1} parent=5 // pred_check
        _
      $region22: #{tpu_custom_call.1} parent=5 // pred_check_branch
        %113 = sbr.rel (%p110) target = $region24
      $region23: #{tpu_custom_call.1} parent=5 // pred_region
        %s114 = ssub.s32 %s15, 1
        %s115 = sand.u32 %s28, 1
        %s116 = scalar_lea.sflag [#allocation5], %s115
        %s117 = sand.u32 %s28, 1
        %s118 = smul.addr %s117, 16
        %s119 = scalar_lea.vmem [#allocation4], %s118
        // Predicated region
        $region25: #{tpu_custom_call.1} parent=23 // pred_check
          %p120 = pneg %p41
        $region26: #{tpu_custom_call.1} parent=23 // pred_check_branch
          %122 = sbr.rel (%p120) target = $region28
        $region27: #{tpu_custom_call.1} parent=23 // pred_region
          %124 = dma.done %s116, 256
        $region28: #{tpu_custom_call.1} parent=23 // pred_fallthru
          _
        %s125 = sand.u32 %s28, 1
        %s126 = scalar_lea.sflag [#allocation5], %s125
        %s127 = sand.u32 %s28, 1
        %s128 = smul.addr %s127, 16
        %s129 = scalar_lea.vmem [#allocation4], %s128
        %p130 = pneg %p41
        %p131 = pneg %p38
        %p132 = pneg %p67
        %p133 = pneg %p64
        %s134 = sand.u32 %s54, 1
        %s135 = scalar_lea.sflag [#allocation6], %s134
        %s136 = sand.u32 %s54, 1
        %s137 = smul.addr %s136, 16
        %s138 = scalar_lea.vmem [#allocation7], %s137
        %s139 = smul.u32 2, %s20
        %s140 = smul.u32 2, %s20
        %v141 = vlaneseq
        %v142 = vshrl.u32 %v141, 7
        %v143 = vadd.s32 %v142, 8
        %v144 = vlaneseq
        %v145 = vand.u32 %v144, 127
        %s146 = smul.u32 %s20, 16
        %v147 = vstv %s146
        %v148 = vadd.s32 %v147, %v142
        %v149 = vadd.s32 %v147, %v143
        %v150 = vmul.u32 %v148, 128
        %v151 = vmul.u32 %v149, 128
        %v152 = vadd.s32 %v150, %v145
        %v153 = vadd.s32 %v151, %v145
        %v154 = vshra.s32 %v152, 1
        %v155 = vshra.s32 %v153, 1
        %s156 = sld [smem:[#allocation3]]
        %v157 = vstv %s156
        %v158 = vadd.s32 %v154, %v157
        %v159 = vadd.s32 %v155, %v157
        %v160 = vxor.u32 %v154, 2654435769
        %v161 = vxor.u32 %v155, 2654435769
        %v162 = vadd.s32 %v158, %v160
        %v163 = vadd.s32 %v159, %v161
        %v164 = vshll.u32 %v160, 13
        %v165 = vshll.u32 %v161, 13
        %v166 = vshrl.u32 %v160, 19
        %v167 = vshrl.u32 %v161, 19
        %v168 = vor.u32 %v164, %v166
        %v169 = vor.u32 %v165, %v167
        %v170 = vxor.u32 %v168, %v162
        %v171 = vxor.u32 %v169, %v163
        %v172 = vadd.s32 %v162, %v170
        %v173 = vadd.s32 %v163, %v171
        %v174 = vshll.u32 %v170, 15
        %v175 = vshll.u32 %v171, 15
        %v176 = vshrl.u32 %v170, 17
        %v177 = vshrl.u32 %v171, 17
        %v178 = vor.u32 %v174, %v176
        %v179 = vor.u32 %v175, %v177
        %v180 = vxor.u32 %v178, %v172
        %v181 = vxor.u32 %v179, %v173
        %v182 = vadd.s32 %v172, %v180
        %v183 = vadd.s32 %v173, %v181
        %v184 = vshll.u32 %v180, 26
        %v185 = vshll.u32 %v181, 26
        %v186 = vshrl.u32 %v180, 6
        %v187 = vshrl.u32 %v181, 6
        %v188 = vor.u32 %v184, %v186
        %v189 = vor.u32 %v185, %v187
        %v190 = vxor.u32 %v188, %v182
        %v191 = vxor.u32 %v189, %v183
        %v192 = vadd.s32 %v182, %v190
        %v193 = vadd.s32 %v183, %v191
        %v194 = vshll.u32 %v190, 6
        %v195 = vshll.u32 %v191, 6
        %v196 = vshrl.u32 %v190, 26
        %v197 = vshrl.u32 %v191, 26
        %v198 = vor.u32 %v194, %v196
        %v199 = vor.u32 %v195, %v197
        %v200 = vxor.u32 %v198, %v192
        %v201 = vxor.u32 %v199, %v193
        %v202 = vadd.s32 %v192, %v200
        %v203 = vadd.s32 %v193, %v201
        %v204 = vshll.u32 %v200, 17
        %v205 = vshll.u32 %v201, 17
        %v206 = vshrl.u32 %v200, 15
        %v207 = vshrl.u32 %v201, 15
        %v208 = vor.u32 %v204, %v206
        %v209 = vor.u32 %v205, %v207
        %v210 = vxor.u32 %v208, %v202
        %v211 = vxor.u32 %v209, %v203
        %v212 = vadd.s32 %v202, %v210
        %v213 = vadd.s32 %v203, %v211
        %v214 = vshll.u32 %v210, 29
        %v215 = vshll.u32 %v211, 29
        %v216 = vshrl.u32 %v210, 3
        %v217 = vshrl.u32 %v211, 3
        %v218 = vor.u32 %v214, %v216
        %v219 = vor.u32 %v215, %v217
        %v220 = vxor.u32 %v218, %v212
        %v221 = vxor.u32 %v219, %v213
        %v222 = vadd.s32 %v212, %v220
        %v223 = vadd.s32 %v213, %v221
        %v224 = vshll.u32 %v220, 16
        %v225 = vshll.u32 %v221, 16
        %v226 = vshrl.u32 %v220, 16
        %v227 = vshrl.u32 %v221, 16
        %v228 = vor.u32 %v224, %v226
        %v229 = vor.u32 %v225, %v227
        %v230 = vxor.u32 %v228, %v222
        %v231 = vxor.u32 %v229, %v223
        %v232 = vadd.s32 %v222, %v230
        %v233 = vadd.s32 %v223, %v231
        %v234 = vshll.u32 %v230, 24
        %v235 = vshll.u32 %v231, 24
        %v236 = vshrl.u32 %v230, 8
        %v237 = vshrl.u32 %v231, 8
        %v238 = vor.u32 %v234, %v236
        %v239 = vor.u32 %v235, %v237
        %v240 = vxor.u32 %v238, %v232
        %v241 = vxor.u32 %v239, %v233
        %v242 = vadd.s32 %v232, %v240
        %v243 = vadd.s32 %v233, %v241
        %v244 = vshll.u32 %v240, 13
        %v245 = vshll.u32 %v241, 13
        %v246 = vshrl.u32 %v240, 19
        %v247 = vshrl.u32 %v241, 19
        %v248 = vor.u32 %v244, %v246
        %v249 = vor.u32 %v245, %v247
        %v250 = vxor.u32 %v248, %v242
        %v251 = vxor.u32 %v249, %v243
        %v252 = vadd.s32 %v242, %v250
        %v253 = vadd.s32 %v243, %v251
        %v254 = vshll.u32 %v250, 15
        %v255 = vshll.u32 %v251, 15
        %v256 = vshrl.u32 %v250, 17
        %v257 = vshrl.u32 %v251, 17
        %v258 = vor.u32 %v254, %v256
        %v259 = vor.u32 %v255, %v257
        %v260 = vxor.u32 %v258, %v252
        %v261 = vxor.u32 %v259, %v253
        %v262 = vadd.s32 %v252, %v260
        %v263 = vadd.s32 %v253, %v261
        %v264 = vshll.u32 %v260, 26
        %v265 = vshll.u32 %v261, 26
        %v266 = vshrl.u32 %v260, 6
        %v267 = vshrl.u32 %v261, 6
        %v268 = vor.u32 %v264, %v266
        %v269 = vor.u32 %v265, %v267
        %v270 = vxor.u32 %v268, %v262
        %v271 = vxor.u32 %v269, %v263
        %v272 = vadd.s32 %v262, %v270
        %v273 = vadd.s32 %v263, %v271
        %v274 = vshll.u32 %v270, 6
        %v275 = vshll.u32 %v271, 6
        %v276 = vshrl.u32 %v270, 26
        %v277 = vshrl.u32 %v271, 26
        %v278 = vor.u32 %v274, %v276
        %v279 = vor.u32 %v275, %v277
        %v280 = vxor.u32 %v278, %v272
        %v281 = vxor.u32 %v279, %v273
        %v282 = vxor.u32 %v280, 466688986
        %v283 = vxor.u32 %v281, 466688986
        %v284 = vadd.s32 %v272, %v282
        %v285 = vadd.s32 %v273, %v283
        %v286 = vshrl.u32 %v284, 9
        %v287 = vshrl.u32 %v285, 9
        %v288 = vor.u32 %v286, 1065353216
        %v289 = vor.u32 %v287, 1065353216
        %v292 = vsub.f32 %v288, 1.0
        %v293 = vsub.f32 %v289, 1.0
        %vm294 = vcmp.ge.f32.partialorder %v292, 0.5
        %vm295 = vcmp.ge.f32.partialorder %v293, 0.5
        %v296 = vsel %vm294, 4.0, 0.0
        %v297 = vsel %vm295, 4.0, 0.0
        %v298 = vld [vmem:[%s119] sm:$0xff]
        %v299 = vld [vmem:[%s119 + $0x8] sm:$0xff]
        %v300 = vmul.f32 %v298, %v296
        %v301 = vmul.f32 %v299, %v297
        %302 = vst [vmem:[%s138] sm:$0xff] %v300
        %303 = vst [vmem:[%s138 + $0x8] sm:$0xff] %v301
        %s304 = sand.u32 %s54, 1
        %s305 = scalar_lea.sflag [#allocation6], %s304
        %s306 = sand.u32 %s54, 1
        %s307 = smul.addr %s306, 16
        %s308 = scalar_lea.vmem [#allocation7], %s307
        // Predicated region
        $region29: #{tpu_custom_call.1} parent=23 // pred_check
          %p309 = pneg %p64
        $region30: #{tpu_custom_call.1} parent=23 // pred_check_branch
          %311 = sbr.rel (%p309) target = $region32
        $region31: #{tpu_custom_call.1} parent=23 // pred_region
          %s312 = smul.u32 2, %s20
          %314 = vsyncadd %s305, 0
          %s315 = smul.addr %s312, 8
          %s316 = scalar_lea.hbm %s2, %s315
          %s317 = sshll.u32 %s308, 4
          %s318 = int_to_ptr.vmem [resolvable:$true] %s317
          %s319 = sshll.u32 %s316, 4
          %s320 = int_to_ptr.hbm [resolvable:$true] %s319
          %325 = dma.vmem_to_hbm [thread:$0]  %s318, 256, %s320, %s305, 128, 128, 8
        $region32: #{tpu_custom_call.1} parent=23 // pred_fallthru
          _
      $region24: #{tpu_custom_call.1} parent=5 // pred_fallthru
        _
      %p326 = scmp.le.s32.totalorder 2, %s15
      // Predicated region
      $region33: #{tpu_custom_call.1} parent=5 // pred_check
        %p327 = pneg %p326
      $region34: #{tpu_custom_call.1} parent=5 // pred_check_branch
        %329 = sbr.rel (%p327) target = $region36
      $region35: #{tpu_custom_call.1} parent=5 // pred_region
        %s330 = ssub.s32 %s15, 2
        // Predicated region
        $region37: #{tpu_custom_call.1} parent=35 // pred_check
          %p331 = pneg %p70
        $region38: #{tpu_custom_call.1} parent=35 // pred_check_branch
          %333 = sbr.rel (%p331) target = $region40
        $region39: #{tpu_custom_call.1} parent=35 // pred_region
          %s334 = sand.u32 %s55, 1
          %s335 = scalar_lea.sflag [#allocation6], %s334
          %s336 = sand.u32 %s55, 1
          %s337 = smul.addr %s336, 16
          %s338 = scalar_lea.vmem [#allocation7], %s337
          %340 = dma.done %s335, 256
        $region40: #{tpu_custom_call.1} parent=35 // pred_fallthru
          _
      $region36: #{tpu_custom_call.1} parent=5 // pred_fallthru
        _
    $region6: #{tpu_custom_call.1} parent=1 // loop_footer
      %s19 = sadd.s32 1, %s15
    $region7: #{tpu_custom_call.1} parent=1 // loop_footer_branch
      %14 = sbr.rel target = $region3
    $region8: #{tpu_custom_call.1} parent=1 // loop_exit
      _
    %341 = vsyncpa [#allocation5], 1
    %s342 = scalar_lea.sflag [#allocation5], 1
    %343 = vsyncpa %s342, 1
    %344 = vsyncpa [#allocation6], 1
    %s345 = scalar_lea.sflag [#allocation6], 1
    %346 = vsyncpa %s345, 1

</llo_original>
